<compile_context>
chip_gen: v7x
topology: tpu7x:2x2x1
jax: 0.10.0
libtpu: 0.0.40
codegen_flags: <defaults>
</compile_context>

<pallas_src>
import functools

import jax
import jax.numpy as jnp
from jax import lax
from jax.experimental import pallas as pl
from jax.experimental.pallas import tpu as pltpu

_E_LAYERS = (0, 1, 2, 3, 4)
_MAX_BATCH_TILE = 128   # rows of x_querry per grid step (multiple of 8)


# ----------------------------------------------------------------------------
# Fused kernel: attention weights + prompt mix (+ optional ortho penalty loss)
# ----------------------------------------------------------------------------
def _coda_prompt_kernel(q_ref, a_ref, k_ref, p_ref, pout_ref, *rest, ortho_mu,
                        with_ortho):
    eps_sq = jnp.float32(1e-24)    # eps = 1e-12 (torch F.normalize default)

    q = q_ref[...]            # (tb, D)
    A = a_ref[...]            # (P, D)
    K = k_ref[...]            # (P, D)

    # n_K = K / max(||K||, eps)  -> folded into A so one MXU matmul gives the numerator.
    k_sq = jnp.sum(K * K, axis=-1, keepdims=True)
    nK = K * lax.rsqrt(jnp.maximum(k_sq, eps_sq))              # EUP rsqrt

    # numer[b,k]    = sum_d q[b,d] * A[k,d] * nK[k,d]
    # denom_sq[b,k] = sum_d (q[b,d] * A[k,d])^2  == ||a_querry[b,k,:]||^2
    numer = lax.dot_general(
        q, A * nK, (((1,), (1,)), ((), ())), preferred_element_type=jnp.float32)
    denom_sq = lax.dot_general(
        q * q, A * A, (((1,), (1,)), ((), ())), preferred_element_type=jnp.float32)
    aq_k = numer * lax.rsqrt(jnp.maximum(denom_sq, eps_sq))    # (tb, P)

    # P_ = einsum('bk,kld->bld') as one (tb,P) x (P, L*E) MXU matmul; lane-dense store.
    pout_ref[...] = lax.dot_general(
        aq_k, p_ref[...], (((1,), (0,)), ((), ())),
        preferred_element_type=jnp.float32).astype(pout_ref.dtype)

    if with_ortho:
        loss_ref, = rest

        # Loss depends only on the (resident) K/A/p operands -> compute once.
        @pl.when(pl.program_id(0) == 0)
        def _():
            def pen(t):
                n = t.shape[0]
                g = lax.dot_general(
                    t, t, (((1,), (1,)), ((), ())),
                    preferred_element_type=jnp.float32)
                row = lax.broadcasted_iota(jnp.int32, (n, n), 0)
                col = lax.broadcasted_iota(jnp.int32, (n, n), 1)
                d = g - (row == col).astype(jnp.float32)
                return jnp.sum(d * d) * jnp.float32(1.0 / (n * n))

            total = (pen(K) + pen(A) + pen(p_ref[...])) * jnp.float32(ortho_mu)
            loss_ref[...] = jnp.full((1, 1), total, dtype=jnp.float32)


def coda_prompt_pallas(x_querry, K, A, p, *, ortho_mu, with_ortho):
    B, D = x_querry.shape
    P, L, E = p.shape
    p_flat = p.reshape(P, L * E)   # flat, dense prompt layout (lane-dense last dim)

    tb = B if B <= _MAX_BATCH_TILE else _MAX_BATCH_TILE
    grid = (pl.cdiv(B, tb),)

    kernel = functools.partial(
        _coda_prompt_kernel, ortho_mu=float(ortho_mu), with_ortho=bool(with_ortho))

    in_specs = [
        pl.BlockSpec((tb, D), lambda i: (i, 0)),       # x_querry batch tile
        pl.BlockSpec((P, D), lambda i: (0, 0)),        # A (resident across grid)
        pl.BlockSpec((P, D), lambda i: (0, 0)),        # K (resident across grid)
        pl.BlockSpec((P, L * E), lambda i: (0, 0)),    # p flat (resident across grid)
    ]
    pout_spec = pl.BlockSpec((tb, L * E), lambda i: (i, 0))
    pout_shape = jax.ShapeDtypeStruct((B, L * E), jnp.float32)

    if with_ortho:
        out_shape = (pout_shape, jax.ShapeDtypeStruct((1, 1), jnp.float32))
        out_specs = (pout_spec, pl.BlockSpec((1, 1), lambda i: (0, 0)))
        sem = ("arbitrary",)     # loss block revisited across batch tiles
    else:
        out_shape = pout_shape
        out_specs = pout_spec
        sem = ("parallel",)      # batch tiles fully independent

    out = pl.pallas_call(
        kernel,
        grid=grid,
        in_specs=in_specs,
        out_specs=out_specs,
        out_shape=out_shape,
        compiler_params=pltpu.CompilerParams(dimension_semantics=sem),
    )(x_querry, A, K, p_flat)

    if with_ortho:
        p_out_flat, loss = out
        return p_out_flat.reshape(B, L, E), loss[0, 0]
    return out.reshape(B, L, E), jnp.float32(0.0)


# ----------------------------------------------------------------------------
# Forward wrapper (mirrors CodaPrompt.forward)
# ----------------------------------------------------------------------------
def coda_prompt_forward(x_querry, l, x_block, params, *, e_pool_size, e_p_length,
                        n_tasks, ortho_mu, task_count, train=False):
    if l not in _E_LAYERS:
        return None, jnp.float32(0.0), x_block

    K = params[f'e_k_{l}']
    A = params[f'e_a_{l}']
    p = params[f'e_p_{l}']

    pt = e_pool_size // n_tasks
    f = (task_count + 1) * pt
    # TODO(synk): torch detaches rows [0:s] during training; that only affects
    # gradients — forward values are identical to a plain [0:f] slice.
    K_use, A_use, p_use = K[:f], A[:f], p[:f]

    with_ortho = bool(train and ortho_mu > 0)
    P_, loss = coda_prompt_pallas(
        x_querry, K_use, A_use, p_use, ortho_mu=ortho_mu, with_ortho=with_ortho)

    i = e_p_length // 2
    Ek, Ev = P_[:, :i, :], P_[:, i:, :]
    return [Ek, Ev], loss, x_block


# ----------------------------------------------------------------------------
# Pure-JAX reference (mirrors the PyTorch module op-for-op)
# ----------------------------------------------------------------------------
def _reference_forward(x_querry, l, x_block, params, *, e_pool_size, e_p_length,
                       n_tasks, ortho_mu, task_count, train=False):
    if l not in _E_LAYERS:
        return None, jnp.float32(0.0), x_block
    K = params[f'e_k_{l}']
    A = params[f'e_a_{l}']
    p = params[f'e_p_{l}']
    pt = e_pool_size // n_tasks
    f = (task_count + 1) * pt
    K, A, p = K[:f], A[:f], p[:f]

    eps = 1e-12
    a_querry = jnp.einsum('bd,kd->bkd', x_querry, A)
    n_K = K / jnp.maximum(jnp.linalg.norm(K, axis=1, keepdims=True), eps)
    q = a_querry / jnp.maximum(jnp.linalg.norm(a_querry, axis=2, keepdims=True), eps)
    aq_k = jnp.einsum('bkd,kd->bk', q, n_K)
    P_ = jnp.einsum('bk,kld->bld', aq_k, p)
    i = e_p_length // 2
    Ek, Ev = P_[:, :i, :], P_[:, i:, :]

    if train and ortho_mu > 0:
        def pen(t):
            n = t.shape[0]
            return jnp.mean((t @ t.T - jnp.eye(n, dtype=t.dtype)) ** 2)
        loss = (pen(K) + pen(A) + pen(p.reshape(p.shape[0], -1))) * ortho_mu
    else:
        loss = jnp.float32(0.0)
    return [Ek, Ev], loss, x_block


if __name__ == "__main__":
    # Small hyperparameters consistent with the module (torch defaults use 768 dims;
    # scaled down here but kept lane-aligned).
    emb_d = 128
    key_dim = 128
    e_pool_size = 16
    e_p_length = 8
    n_tasks = 4
    ortho_weight = 0.1
    task_count = 1          # -> forward uses the first (task_count+1)*pool/n_tasks = 8 rows
    layer = 2               # in e_layers

    batch = 4
    token_len = 16          # x_block is only passed through

    key = jax.random.PRNGKey(0)
    k1, k2, k3, k4, k5, k6 = jax.random.split(key, 6)

    # TODO(synk): gram_schmidt init (sequential, data-dependent re-draw loop) is an
    # init-time routine, not part of forward; plain uniform init is used here.
    params = {
        f'e_p_{layer}': jax.random.uniform(k1, (e_pool_size, e_p_length, emb_d), jnp.float32),
        f'e_k_{layer}': jax.random.uniform(k2, (e_pool_size, key_dim), jnp.float32),
        f'e_a_{layer}': jax.random.uniform(k3, (e_pool_size, key_dim), jnp.float32),
    }
    x_querry = jax.random.normal(k4, (batch, key_dim), jnp.float32)
    x_block = jax.random.normal(k5, (batch, token_len, emb_d), jnp.float32)

    hp = dict(e_pool_size=e_pool_size, e_p_length=e_p_length, n_tasks=n_tasks,
              ortho_mu=ortho_weight, task_count=task_count)

    # --- train path ---
    prompts, loss, xb = coda_prompt_forward(x_querry, layer, x_block, params,
                                            train=True, **hp)
    jax.block_until_ready(prompts[0]); jax.block_until_ready(prompts[1])
    jax.block_until_ready(loss)

    prompts_ref, loss_ref, _ = _reference_forward(x_querry, layer, x_block, params,
                                                  train=True, **hp)
    i = e_p_length // 2
    assert prompts[0].shape == (batch, i, emb_d)
    assert prompts[1].shape == (batch, e_p_length - i, emb_d)
    assert jnp.allclose(prompts[0], prompts_ref[0], atol=1e-3, rtol=1e-3)
    assert jnp.allclose(prompts[1], prompts_ref[1], atol=1e-3, rtol=1e-3)
    assert jnp.allclose(loss, loss_ref, rtol=1e-2, atol=1e-2)
    assert xb is x_block

    # --- eval path (no ortho loss output at all) ---
    prompts_e, loss_e, _ = coda_prompt_forward(x_querry, layer, x_block, params,
                                               train=False, **hp)
    prompts_e_ref, _, _ = _reference_forward(x_querry, layer, x_block, params,
                                             train=False, **hp)
    jax.block_until_ready(prompts_e[0])
    assert float(loss_e) == 0.0
    assert jnp.allclose(prompts_e[0], prompts_e_ref[0], atol=1e-3, rtol=1e-3)
    assert jnp.allclose(prompts_e[1], prompts_e_ref[1], atol=1e-3, rtol=1e-3)

    # --- multi-tile batch (exercises the batch grid: 256 rows -> 2 grid steps) ---
    big_batch = 256
    xq_big = jax.random.normal(k6, (big_batch, key_dim), jnp.float32)
    prompts_b, loss_b, _ = coda_prompt_forward(xq_big, layer, x_block, params,
                                               train=True, **hp)
    prompts_b_ref, loss_b_ref, _ = _reference_forward(xq_big, layer, x_block, params,
                                                      train=True, **hp)
    jax.block_until_ready(prompts_b[0])
    assert jnp.allclose(prompts_b[0], prompts_b_ref[0], atol=1e-3, rtol=1e-3)
    assert jnp.allclose(prompts_b[1], prompts_b_ref[1], atol=1e-3, rtol=1e-3)
    assert jnp.allclose(loss_b, loss_b_ref, rtol=1e-2, atol=1e-2)

    # --- layer not in e_layers: pass-through ---
    pr_none, loss_none, xb_none = coda_prompt_forward(x_querry, 7, x_block, params,
                                                      train=True, **hp)
    assert pr_none is None and float(loss_none) == 0.0 and xb_none is x_block

    print("KERNEL_OK")
</pallas_src>

<mosaic_0001>
module attributes {stable_mosaic.version = 11 : i64} {
  func.func @_coda_prompt_kernel(%arg0: i32, %arg1: memref<4x128xf32, #tpu.memory_space<vmem>>, %arg2: memref<8x128xf32, #tpu.memory_space<vmem>>, %arg3: memref<8x128xf32, #tpu.memory_space<vmem>>, %arg4: memref<8x1024xf32, #tpu.memory_space<vmem>>, %arg5: memref<4x1024xf32, #tpu.memory_space<vmem>>, %arg6: memref<1x1xf32, #tpu.memory_space<vmem>>) attributes {dimension_semantics = [#tpu.dimension_semantics<arbitrary>], iteration_bounds = array<i64: 1>, scalar_prefetch = 0 : i64, scratch_operands = 0 : i64, tpu.core_type = #tpu.core_type<tc>, window_params = [{transform_indices = @transform_0, window_bounds = array<i64: 4, 128>}, {pipeline_mode = #tpu.pipeline_mode<synchronous>, transform_indices = @transform_1, window_bounds = array<i64: 8, 128>}, {pipeline_mode = #tpu.pipeline_mode<synchronous>, transform_indices = @transform_2, window_bounds = array<i64: 8, 128>}, {pipeline_mode = #tpu.pipeline_mode<synchronous>, transform_indices = @transform_3, window_bounds = array<i64: 8, 1024>}, {transform_indices = @transform_4, window_bounds = array<i64: 4, 1024>}, {pipeline_mode = #tpu.pipeline_mode<synchronous>, transform_indices = @transform_5, window_bounds = array<i64: 1, 1>}]} {
    %c0 = arith.constant 0 : index
    %c0_0 = arith.constant 0 : index
    %0 = vector.load %arg1[%c0, %c0_0] : memref<4x128xf32, #tpu.memory_space<vmem>>, vector<4x128xf32>
    %c0_1 = arith.constant 0 : index
    %c0_2 = arith.constant 0 : index
    %1 = vector.load %arg2[%c0_1, %c0_2] : memref<8x128xf32, #tpu.memory_space<vmem>>, vector<8x128xf32>
    %c0_3 = arith.constant 0 : index
    %c0_4 = arith.constant 0 : index
    %2 = vector.load %arg3[%c0_3, %c0_4] : memref<8x128xf32, #tpu.memory_space<vmem>>, vector<8x128xf32>
    %3 = arith.mulf %2, %2 : vector<8x128xf32>
    %cst = arith.constant dense<0.000000e+00> : vector<8xf32>
    %4 = vector.multi_reduction <add>, %3, %cst [1] : vector<8x128xf32> to vector<8xf32>
    %5 = vector.shape_cast %4 : vector<8xf32> to vector<8x1xf32>
    %cst_5 = arith.constant 1.000000e-24 : f32
    %6 = vector.broadcast %cst_5 : f32 to vector<8x1xf32>
    %7 = arith.maximumf %5, %6 : vector<8x1xf32>
    %8 = math.rsqrt %7 : vector<8x1xf32>
    %9 = vector.broadcast %8 : vector<8x1xf32> to vector<8x128xf32>
    %10 = arith.mulf %2, %9 : vector<8x128xf32>
    %11 = arith.mulf %1, %10 : vector<8x128xf32>
    %cst_6 = arith.constant dense<0.000000e+00> : vector<4x8xf32>
    %12 = tpu.matmul %0, %11, %cst_6 {dimension_numbers = #tpu.dot_dimension_numbers<[1], [1], [0], [0], [0, 0, 1, 0], [], []>} : vector<4x128xf32>, vector<8x128xf32>, vector<4x8xf32> -> vector<4x8xf32>
    %13 = arith.mulf %0, %0 : vector<4x128xf32>
    %14 = arith.mulf %1, %1 : vector<8x128xf32>
    %cst_7 = arith.constant dense<0.000000e+00> : vector<4x8xf32>
    %15 = tpu.matmul %13, %14, %cst_7 {dimension_numbers = #tpu.dot_dimension_numbers<[1], [1], [0], [0], [0, 0, 1, 0], [], []>} : vector<4x128xf32>, vector<8x128xf32>, vector<4x8xf32> -> vector<4x8xf32>
    %cst_8 = arith.constant 1.000000e-24 : f32
    %16 = vector.broadcast %cst_8 : f32 to vector<4x8xf32>
    %17 = arith.maximumf %15, %16 : vector<4x8xf32>
    %18 = math.rsqrt %17 : vector<4x8xf32>
    %19 = arith.mulf %12, %18 : vector<4x8xf32>
    %c0_9 = arith.constant 0 : index
    %c0_10 = arith.constant 0 : index
    %20 = vector.load %arg4[%c0_9, %c0_10] : memref<8x1024xf32, #tpu.memory_space<vmem>>, vector<8x1024xf32>
    %cst_11 = arith.constant dense<0.000000e+00> : vector<4x1024xf32>
    %21 = tpu.matmul %19, %20, %cst_11 {dimension_numbers = #tpu.dot_dimension_numbers<[1], [0], [0], [1], [0, 0, 1, 1], [], []>} : vector<4x8xf32>, vector<8x1024xf32>, vector<4x1024xf32> -> vector<4x1024xf32>
    %c0_12 = arith.constant 0 : index
    %c0_13 = arith.constant 0 : index
    %22 = vector.load %arg5[%c0_12, %c0_13] : memref<4x1024xf32, #tpu.memory_space<vmem>>, vector<4x1024xf32>
    tpu.vector_store %arg5[%c0_12, %c0_13], %21 {strides = array<i32>} : memref<4x1024xf32, #tpu.memory_space<vmem>>, vector<4x1024xf32>,
    %c0_i32 = arith.constant 0 : i32
    %23 = arith.cmpi eq, %arg0, %c0_i32 : i32
    %24 = arith.extui %23 : i1 to i32
    %c0_i32_14 = arith.constant 0 : i32
    %25 = arith.cmpi ne, %24, %c0_i32_14 : i32
    scf.if %25 {
      %cst_15 = arith.constant dense<0.000000e+00> : vector<8x8xf32>
      %26 = tpu.matmul %2, %2, %cst_15 {dimension_numbers = #tpu.dot_dimension_numbers<[1], [1], [0], [0], [0, 0, 1, 0], [], []>} : vector<8x128xf32>, vector<8x128xf32>, vector<8x8xf32> -> vector<8x8xf32>
      %27 = tpu.iota {dimensions = array<i32: 0>} : vector<8x8xi32>
      %28 = tpu.iota {dimensions = array<i32: 1>} : vector<8x8xi32>
      %29 = arith.cmpi eq, %27, %28 : vector<8x8xi32>
      %30 = arith.extui %29 : vector<8x8xi1> to vector<8x8xi32>
      %31 = arith.sitofp %30 : vector<8x8xi32> to vector<8x8xf32>
      %32 = arith.subf %26, %31 : vector<8x8xf32>
      %33 = arith.mulf %32, %32 : vector<8x8xf32>
      %34 = vector.shape_cast %33 : vector<8x8xf32> to vector<1x8x8xf32>
      %cst_16 = arith.constant dense<0.000000e+00> : vector<1xf32>
      %35 = vector.multi_reduction <add>, %34, %cst_16 [1, 2] : vector<1x8x8xf32> to vector<1xf32>
      %36 = vector.shape_cast %35 : vector<1xf32> to vector<1x1x1xf32>
      %37 = vector.extract %36[0, 0, 0] : f32 from vector<1x1x1xf32>
      %cst_17 = arith.constant 1.562500e-02 : f32
      %38 = arith.mulf %37, %cst_17 : f32
      %cst_18 = arith.constant dense<0.000000e+00> : vector<8x8xf32>
      %39 = tpu.matmul %1, %1, %cst_18 {dimension_numbers = #tpu.dot_dimension_numbers<[1], [1], [0], [0], [0, 0, 1, 0], [], []>} : vector<8x128xf32>, vector<8x128xf32>, vector<8x8xf32> -> vector<8x8xf32>
      %40 = tpu.iota {dimensions = array<i32: 0>} : vector<8x8xi32>
      %41 = tpu.iota {dimensions = array<i32: 1>} : vector<8x8xi32>
      %42 = arith.cmpi eq, %40, %41 : vector<8x8xi32>
      %43 = arith.extui %42 : vector<8x8xi1> to vector<8x8xi32>
      %44 = arith.sitofp %43 : vector<8x8xi32> to vector<8x8xf32>
      %45 = arith.subf %39, %44 : vector<8x8xf32>
      %46 = arith.mulf %45, %45 : vector<8x8xf32>
      %47 = vector.shape_cast %46 : vector<8x8xf32> to vector<1x8x8xf32>
      %cst_19 = arith.constant dense<0.000000e+00> : vector<1xf32>
      %48 = vector.multi_reduction <add>, %47, %cst_19 [1, 2] : vector<1x8x8xf32> to vector<1xf32>
      %49 = vector.shape_cast %48 : vector<1xf32> to vector<1x1x1xf32>
      %50 = vector.extract %49[0, 0, 0] : f32 from vector<1x1x1xf32>
      %cst_20 = arith.constant 1.562500e-02 : f32
      %51 = arith.mulf %50, %cst_20 : f32
      %52 = arith.addf %38, %51 : f32
      %c0_21 = arith.constant 0 : index
      %c0_22 = arith.constant 0 : index
      %53 = vector.load %arg4[%c0_21, %c0_22] : memref<8x1024xf32, #tpu.memory_space<vmem>>, vector<8x1024xf32>
      %cst_23 = arith.constant dense<0.000000e+00> : vector<8x8xf32>
      %54 = tpu.matmul %53, %53, %cst_23 {dimension_numbers = #tpu.dot_dimension_numbers<[1], [1], [0], [0], [0, 0, 1, 0], [], []>} : vector<8x1024xf32>, vector<8x1024xf32>, vector<8x8xf32> -> vector<8x8xf32>
      %55 = tpu.iota {dimensions = array<i32: 0>} : vector<8x8xi32>
      %56 = tpu.iota {dimensions = array<i32: 1>} : vector<8x8xi32>
      %57 = arith.cmpi eq, %55, %56 : vector<8x8xi32>
      %58 = arith.extui %57 : vector<8x8xi1> to vector<8x8xi32>
      %59 = arith.sitofp %58 : vector<8x8xi32> to vector<8x8xf32>
      %60 = arith.subf %54, %59 : vector<8x8xf32>
      %61 = arith.mulf %60, %60 : vector<8x8xf32>
      %62 = vector.shape_cast %61 : vector<8x8xf32> to vector<1x8x8xf32>
      %cst_24 = arith.constant dense<0.000000e+00> : vector<1xf32>
      %63 = vector.multi_reduction <add>, %62, %cst_24 [1, 2] : vector<1x8x8xf32> to vector<1xf32>
      %64 = vector.shape_cast %63 : vector<1xf32> to vector<1x1x1xf32>
      %65 = vector.extract %64[0, 0, 0] : f32 from vector<1x1x1xf32>
      %cst_25 = arith.constant 1.562500e-02 : f32
      %66 = arith.mulf %65, %cst_25 : f32
      %67 = arith.addf %52, %66 : f32
      %cst_26 = arith.constant 1.000000e-01 : f32
      %68 = arith.mulf %67, %cst_26 : f32
      %69 = vector.broadcast %68 : f32 to vector<1x1xf32>
      %c0_27 = arith.constant 0 : index
      %c0_28 = arith.constant 0 : index
      %70 = vector.load %arg6[%c0_27, %c0_28] : memref<1x1xf32, #tpu.memory_space<vmem>>, vector<1x1xf32>
      tpu.vector_store %arg6[%c0_27, %c0_28], %69 {strides = array<i32>} : memref<1x1xf32, #tpu.memory_space<vmem>>, vector<1x1xf32>,
    } else {
    }
    return
  }
  func.func @transform_0(%arg0: i32) -> (i32, i32) {
    %c0_i32 = arith.constant 0 : i32
    %c0_i32_0 = arith.constant 0 : i32
    return %arg0, %c0_i32 : i32, i32
  }
  func.func @transform_1(%arg0: i32) -> (i32, i32) {
    %c0_i32 = arith.constant 0 : i32
    %c0_i32_0 = arith.constant 0 : i32
    %c0_i32_1 = arith.constant 0 : i32
    return %c0_i32, %c0_i32_0 : i32, i32
  }
  func.func @transform_2(%arg0: i32) -> (i32, i32) {
    %c0_i32 = arith.constant 0 : i32
    %c0_i32_0 = arith.constant 0 : i32
    %c0_i32_1 = arith.constant 0 : i32
    return %c0_i32, %c0_i32_0 : i32, i32
  }
  func.func @transform_3(%arg0: i32) -> (i32, i32) {
    %c0_i32 = arith.constant 0 : i32
    %c0_i32_0 = arith.constant 0 : i32
    %c0_i32_1 = arith.constant 0 : i32
    return %c0_i32, %c0_i32_0 : i32, i32
  }
  func.func @transform_4(%arg0: i32) -> (i32, i32) {
    %c0_i32 = arith.constant 0 : i32
    %c0_i32_0 = arith.constant 0 : i32
    return %arg0, %c0_i32 : i32, i32
  }
  func.func @transform_5(%arg0: i32) -> (i32, i32) {
    %c0_i32 = arith.constant 0 : i32
    %c0_i32_0 = arith.constant 0 : i32
    %c0_i32_1 = arith.constant 0 : i32
    return %c0_i32, %c0_i32_0 : i32, i32
  }
}

</mosaic_0001>

<llo_original>
// kernel: tpu_custom_call.1
$region0: #{tpu_custom_call.1}
  #allocation0 [shape = 'u32[]', space=smem, size = 0x4, offset = 0x4, fixed_abs, tag = 'smem constant byte address 0x4 - core index']
  #allocation1 [shape = 'u32[144,128]{1,0:T(1,128)}', space=vmem, size = 0x12000, scoped, tag = 'internal scratch']
  %s0 = inlined_call_operand.hbm [shape: f32[4,128], index: 0, kind: input, shape index: {}]
  %s1 = inlined_call_operand.hbm [shape: f32[8,128], index: 1, kind: input, shape index: {}]
  %s2 = inlined_call_operand.hbm [shape: f32[8,128], index: 2, kind: input, shape index: {}]
  %s3 = inlined_call_operand.hbm [shape: f32[8,1024], index: 3, kind: input, shape index: {}]
  %s4 = inlined_call_operand.hbm [shape: f32[4,1024], index: 4, kind: output, shape index: {0}]
  %s5 = inlined_call_operand.hbm [shape: f32[1,1], index: 5, kind: output, shape index: {1}]
  %6 = xla_tuple %s4, %s5
  %s7 = sld [smem:[#allocation0]]
  $region54: #{tpu_custom_call.1} parent=0
    _
  %s9 = ssub.s32 1, %s7
  %s10 = scalar_select 0, %s9, %s7
  $region1: #{tpu_custom_call.1} parent=0
    #allocation2 [shape = 'u8[2048]{0}', space=vmem, size = 0x800, scoped, tag = 'input window, operand 0, single buffered']
    #allocation3 [shape = 's32[1]{0}', space=sflag, size = 0x4, scoped, tag = 'scoped memory for tpu_custom_call.1']
    #allocation4 [shape = 's32[1]{0}', space=sflag, size = 0x4, scoped, tag = 'scoped memory for tpu_custom_call.1']
    #allocation5 [shape = 'u8[4096]{0}', space=vmem, size = 0x1000, scoped, tag = 'input window, operand 1, single buffered']
    #allocation6 [shape = 's32[1]{0}', space=sflag, size = 0x4, scoped, tag = 'scoped memory for tpu_custom_call.1']
    #allocation7 [shape = 'u8[4096]{0}', space=vmem, size = 0x1000, scoped, tag = 'input window, operand 2, single buffered']
    #allocation8 [shape = 'u8[32768]{0}', space=vmem, size = 0x8000, scoped, tag = 'input window, operand 3, single buffered']
    #allocation9 [shape = 's32[1]{0}', space=sflag, size = 0x4, scoped, tag = 'scoped memory for tpu_custom_call.1']
    #allocation10 [shape = 'u8[16384]{0}', space=vmem, size = 0x4000, scoped, tag = 'output window, operand 0, single buffered']
    #allocation11 [shape = 'u8[512]{0}', space=vmem, size = 0x400, scoped, tag = 'output window, operand 1, single buffered']
    #allocation12 [shape = 's32[1]{0}', space=sflag, size = 0x4, scoped, tag = 'scoped memory for tpu_custom_call.1']
    %11 = vsyncpa [#allocation3], 0
    %12 = vsyncpa [#allocation6], 0
    %13 = vsyncpa [#allocation9], 0
    %14 = vsyncpa [#allocation4], 0
    %15 = vsyncpa [#allocation12], 0
    // Predicated region
    $region2: #{tpu_custom_call.1} parent=1 // pred_check
      _
    $region3: #{tpu_custom_call.1} parent=1 // pred_check_branch
      %17 = sbr.rel (0) target = $region5
    $region4: #{tpu_custom_call.1} parent=1 // pred_region
      %s19 = ssub.s32 64, 64
      %20 = vsyncadd [#allocation3], %s19
      %s22 = sshll.u32 [#allocation2], 4
      %s23 = int_to_ptr.vmem [resolvable:$true] %s22
      %25 = dma.hbm_to_vmem [thread:$0]  %s0, 64, %s23, [#allocation3]
    $region5: #{tpu_custom_call.1} parent=1 // pred_fallthru
      _
    // Predicated region
    $region6: #{tpu_custom_call.1} parent=1 // pred_check
      _
    $region7: #{tpu_custom_call.1} parent=1 // pred_check_branch
      %27 = sbr.rel (0) target = $region9
    $region8: #{tpu_custom_call.1} parent=1 // pred_region
      %s29 = ssub.s32 128, 128
      %30 = vsyncadd [#allocation6], %s29
      %s32 = sshll.u32 [#allocation5], 4
      %s33 = int_to_ptr.vmem [resolvable:$true] %s32
      %35 = dma.hbm_to_vmem [thread:$0]  %s1, 128, %s33, [#allocation6]
    $region9: #{tpu_custom_call.1} parent=1 // pred_fallthru
      _
    // Predicated region
    $region10: #{tpu_custom_call.1} parent=1 // pred_check
      _
    $region11: #{tpu_custom_call.1} parent=1 // pred_check_branch
      %37 = sbr.rel (0) target = $region13
    $region12: #{tpu_custom_call.1} parent=1 // pred_region
      %s39 = ssub.s32 128, 128
      %40 = vsyncadd [#allocation6], %s39
      %s42 = sshll.u32 [#allocation7], 4
      %s43 = int_to_ptr.vmem [resolvable:$true] %s42
      %45 = dma.hbm_to_vmem [thread:$0]  %s2, 128, %s43, [#allocation6]
    $region13: #{tpu_custom_call.1} parent=1 // pred_fallthru
      _
    // Predicated region
    $region14: #{tpu_custom_call.1} parent=1 // pred_check
      _
    $region15: #{tpu_custom_call.1} parent=1 // pred_check_branch
      %47 = sbr.rel (0) target = $region17
    $region16: #{tpu_custom_call.1} parent=1 // pred_region
      %s49 = ssub.s32 1024, 1024
      %50 = vsyncadd [#allocation9], %s49
      %s52 = sshll.u32 [#allocation8], 4
      %s53 = int_to_ptr.vmem [resolvable:$true] %s52
      %55 = dma.hbm_to_vmem [thread:$0]  %s3, 1024, %s53, [#allocation9]
    $region17: #{tpu_custom_call.1} parent=1 // pred_fallthru
      _
    // Predicated region
    $region18: #{tpu_custom_call.1} parent=1 // pred_check
      _
    $region19: #{tpu_custom_call.1} parent=1 // pred_check_branch
      %57 = sbr.rel (0) target = $region21
    $region20: #{tpu_custom_call.1} parent=1 // pred_region
      %58 = dma.done [#allocation3], 64
    $region21: #{tpu_custom_call.1} parent=1 // pred_fallthru
      _
    // Predicated region
    $region22: #{tpu_custom_call.1} parent=1 // pred_check
      _
    $region23: #{tpu_custom_call.1} parent=1 // pred_check_branch
      %60 = sbr.rel (0) target = $region25
    $region24: #{tpu_custom_call.1} parent=1 // pred_region
      %61 = dma.done [#allocation6], 128
    $region25: #{tpu_custom_call.1} parent=1 // pred_fallthru
      _
    // Predicated region
    $region26: #{tpu_custom_call.1} parent=1 // pred_check
      _
    $region27: #{tpu_custom_call.1} parent=1 // pred_check_branch
      %63 = sbr.rel (0) target = $region29
    $region28: #{tpu_custom_call.1} parent=1 // pred_region
      %64 = dma.done [#allocation6], 128
    $region29: #{tpu_custom_call.1} parent=1 // pred_fallthru
      _
    // Predicated region
    $region30: #{tpu_custom_call.1} parent=1 // pred_check
      _
    $region31: #{tpu_custom_call.1} parent=1 // pred_check_branch
      %66 = sbr.rel (0) target = $region33
    $region32: #{tpu_custom_call.1} parent=1 // pred_region
      %67 = dma.done [#allocation9], 1024
    $region33: #{tpu_custom_call.1} parent=1 // pred_fallthru
      _
    %v68 = vld [vmem:[#allocation2] sm:$0xf]
    %v69 = vld [vmem:[#allocation5] sm:$0xff]
    %v70 = vld [vmem:[#allocation7] sm:$0xff]
    %v71 = vmul.f32 %v70, %v70
    %72 = vadd.xlane.f32.xlu0 %v71
    %v73 = vpop.xlane.xlu0 %72
    %v74 = vmax.f32 %v73, 1e-24
    %v75 = vrsqrt.pop %v74
    %v76 = vmul.f32 %v70, %v75
    %v77 = vmul.f32 %v69, %v76
    %78 = vmatprep.subr.mxu0 0.0
    %79 = vmatpush1.xpose.msra.mxu0 %v77
    %80 = vmatprep.subr.mxu0 0.0
    %81 = vmatpush1.xpose.msra.mxu0 0.0
    %82 = vmatprep.subr.mxu0 0.0
    %83 = vmatpush1.xpose.msra.mxu0 0.0
    %84 = vmatprep.subr.mxu0 0.0
    %85 = vmatpush1.xpose.msra.mxu0 0.0
    %86 = vmatprep.subr.mxu0 0.0
    %87 = vmatpush1.xpose.msra.mxu0 0.0
    %88 = vmatprep.subr.mxu0 0.0
    %89 = vmatpush1.xpose.msra.mxu0 0.0
    %90 = vmatprep.subr.mxu0 0.0
    %91 = vmatpush1.xpose.msra.mxu0 0.0
    %92 = vmatprep.subr.mxu0 0.0
    %93 = vmatpush1.xpose.msra.mxu0 0.0
    %94 = vmatprep.subr.mxu0 0.0
    %95 = vmatpush1.xpose.msra.mxu0 0.0
    %96 = vmatprep.subr.mxu0 0.0
    %97 = vmatpush1.xpose.msra.mxu0 0.0
    %98 = vmatprep.subr.mxu0 0.0
    %99 = vmatpush1.xpose.msra.mxu0 0.0
    %100 = vmatprep.subr.mxu0 0.0
    %101 = vmatpush1.xpose.msra.mxu0 0.0
    %102 = vmatprep.subr.mxu0 0.0
    %103 = vmatpush1.xpose.msra.mxu0 0.0
    %104 = vmatprep.subr.mxu0 0.0
    %105 = vmatpush1.xpose.msra.mxu0 0.0
    %106 = vmatprep.subr.mxu0 0.0
    %107 = vmatpush1.xpose.msra.mxu0 0.0
    %108 = vmatprep.subr.mxu0 0.0
    %109 = vmatpush1.xpose.msra.mxu0 0.0
    %110 = vmatprep.subr.mxu0 0.0
    %111 = vmatpush1.xpose.msra.mxu0 0.0
    %112 = vmatprep.subr.mxu0 0.0
    %113 = vmatpush1.xpose.msra.mxu0 0.0
    %114 = vmatprep.subr.mxu0 0.0
    %115 = vmatpush1.xpose.msra.mxu0 0.0
    %116 = vmatprep.subr.mxu0 0.0
    %117 = vmatpush1.xpose.msra.mxu0 0.0
    %118 = vmatprep.subr.mxu0 0.0
    %119 = vmatpush1.xpose.msra.mxu0 0.0
    %120 = vmatprep.subr.mxu0 0.0
    %121 = vmatpush1.xpose.msra.mxu0 0.0
    %122 = vmatprep.subr.mxu0 0.0
    %123 = vmatpush1.xpose.msra.mxu0 0.0
    %124 = vmatprep.subr.mxu0 0.0
    %125 = vmatpush1.xpose.msra.mxu0 0.0
    %126 = vmatprep.subr.mxu0 0.0
    %127 = vmatpush1.xpose.msra.mxu0 0.0
    %128 = vmatprep.subr.mxu0 0.0
    %129 = vmatpush1.xpose.msra.mxu0 0.0
    %130 = vmatprep.subr.mxu0 0.0
    %131 = vmatpush1.xpose.msra.mxu0 0.0
    %132 = vmatprep.subr.mxu0 0.0
    %133 = vmatpush1.xpose.msra.mxu0 0.0
    %134 = vmatprep.subr.mxu0 0.0
    %135 = vmatpush1.xpose.msra.mxu0 0.0
    %136 = vmatprep.subr.mxu0 0.0
    %137 = vmatpush1.xpose.msra.mxu0 0.0
    %138 = vmatprep.subr.mxu0 0.0
    %139 = vmatpush1.xpose.msra.mxu0 0.0
    %140 = vmatprep.subr.mxu0 0.0
    %141 = vmatpush1.xpose.msra.mxu0 0.0
    %142 = vmatprep.mubr.f32.mxu0 0.0
    %143 = vmatmul.mubr.f32.gmra.mrb[0].mxu0 %v68
    %v144 = vpop.f32.mrb[0].mxu0
    %v145 = vadd.f32 0.0, %v144
    %v146 = vpop.f32.mrb[0].mxu0
    %147 = vdwg.mxu0
    %v148 = vmul.f32 %v68, %v68
    %v149 = vmul.f32 %v69, %v69
    %150 = vmatprep.subr.mxu0 0.0
    %151 = vmatpush1.xpose.msra.mxu0 %v149
    %152 = vmatprep.subr.mxu0 0.0
    %153 = vmatpush1.xpose.msra.mxu0 0.0
    %154 = vmatprep.subr.mxu0 0.0
    %155 = vmatpush1.xpose.msra.mxu0 0.0
    %156 = vmatprep.subr.mxu0 0.0
    %157 = vmatpush1.xpose.msra.mxu0 0.0
    %158 = vmatprep.subr.mxu0 0.0
    %159 = vmatpush1.xpose.msra.mxu0 0.0
    %160 = vmatprep.subr.mxu0 0.0
    %161 = vmatpush1.xpose.msra.mxu0 0.0
    %162 = vmatprep.subr.mxu0 0.0
    %163 = vmatpush1.xpose.msra.mxu0 0.0
    %164 = vmatprep.subr.mxu0 0.0
    %165 = vmatpush1.xpose.msra.mxu0 0.0
    %166 = vmatprep.subr.mxu0 0.0
    %167 = vmatpush1.xpose.msra.mxu0 0.0
    %168 = vmatprep.subr.mxu0 0.0
    %169 = vmatpush1.xpose.msra.mxu0 0.0
    %170 = vmatprep.subr.mxu0 0.0
    %171 = vmatpush1.xpose.msra.mxu0 0.0
    %172 = vmatprep.subr.mxu0 0.0
    %173 = vmatpush1.xpose.msra.mxu0 0.0
    %174 = vmatprep.subr.mxu0 0.0
    %175 = vmatpush1.xpose.msra.mxu0 0.0
    %176 = vmatprep.subr.mxu0 0.0
    %177 = vmatpush1.xpose.msra.mxu0 0.0
    %178 = vmatprep.subr.mxu0 0.0
    %179 = vmatpush1.xpose.msra.mxu0 0.0
    %180 = vmatprep.subr.mxu0 0.0
    %181 = vmatpush1.xpose.msra.mxu0 0.0
    %182 = vmatprep.subr.mxu0 0.0
    %183 = vmatpush1.xpose.msra.mxu0 0.0
    %184 = vmatprep.subr.mxu0 0.0
    %185 = vmatpush1.xpose.msra.mxu0 0.0
    %186 = vmatprep.subr.mxu0 0.0
    %187 = vmatpush1.xpose.msra.mxu0 0.0
    %188 = vmatprep.subr.mxu0 0.0
    %189 = vmatpush1.xpose.msra.mxu0 0.0
    %190 = vmatprep.subr.mxu0 0.0
    %191 = vmatpush1.xpose.msra.mxu0 0.0
    %192 = vmatprep.subr.mxu0 0.0
    %193 = vmatpush1.xpose.msra.mxu0 0.0
    %194 = vmatprep.subr.mxu0 0.0
    %195 = vmatpush1.xpose.msra.mxu0 0.0
    %196 = vmatprep.subr.mxu0 0.0
    %197 = vmatpush1.xpose.msra.mxu0 0.0
    %198 = vmatprep.subr.mxu0 0.0
    %199 = vmatpush1.xpose.msra.mxu0 0.0
    %200 = vmatprep.subr.mxu0 0.0
    %201 = vmatpush1.xpose.msra.mxu0 0.0
    %202 = vmatprep.subr.mxu0 0.0
    %203 = vmatpush1.xpose.msra.mxu0 0.0
    %204 = vmatprep.subr.mxu0 0.0
    %205 = vmatpush1.xpose.msra.mxu0 0.0
    %206 = vmatprep.subr.mxu0 0.0
    %207 = vmatpush1.xpose.msra.mxu0 0.0
    %208 = vmatprep.subr.mxu0 0.0
    %209 = vmatpush1.xpose.msra.mxu0 0.0
    %210 = vmatprep.subr.mxu0 0.0
    %211 = vmatpush1.xpose.msra.mxu0 0.0
    %212 = vmatprep.subr.mxu0 0.0
    %213 = vmatpush1.xpose.msra.mxu0 0.0
    %214 = vmatprep.mubr.f32.mxu0 0.0
    %215 = vmatmul.mubr.f32.gmra.mrb[0].mxu0 %v148
    %v216 = vpop.f32.mrb[0].mxu0
    %v217 = vadd.f32 0.0, %v216
    %v218 = vpop.f32.mrb[0].mxu0
    %219 = vdwg.mxu0
    %v220 = vmax.f32 %v217, 1e-24
    %v221 = vrsqrt.pop %v220
    %v222 = vmul.f32 %v145, %v221
    %v223 = vld [vmem:[#allocation8] sm:$0xff]
    %v224 = vld [vmem:[#allocation8 + $0x8] sm:$0xff]
    %v225 = vld [vmem:[#allocation8 + $0x10] sm:$0xff]
    %v226 = vld [vmem:[#allocation8 + $0x18] sm:$0xff]
    %v227 = vld [vmem:[#allocation8 + $0x20] sm:$0xff]
    %v228 = vld [vmem:[#allocation8 + $0x28] sm:$0xff]
    %v229 = vld [vmem:[#allocation8 + $0x30] sm:$0xff]
    %v230 = vld [vmem:[#allocation8 + $0x38] sm:$0xff]
    %vm231 = vcmask 64512
    %v233 = vsel %vm231, %v222, 0
    %235 = vmatprep.subr.mxu0 %v224
    %236 = vmatpush1.msra.mxu0 %v223
    %237 = vmatprep.subr.mxu0 0.0
    %238 = vmatpush1.msra.mxu0 0.0
    %239 = vmatprep.subr.mxu0 0.0
    %240 = vmatpush1.msra.mxu0 0.0
    %241 = vmatprep.subr.mxu0 0.0
    %242 = vmatpush1.msra.mxu0 0.0
    %243 = vmatprep.subr.mxu0 0.0
    %244 = vmatpush1.msra.mxu0 0.0
    %245 = vmatprep.subr.mxu0 0.0
    %246 = vmatpush1.msra.mxu0 0.0
    %247 = vmatprep.subr.mxu0 0.0
    %248 = vmatpush1.msra.mxu0 0.0
    %249 = vmatprep.subr.mxu0 0.0
    %250 = vmatpush1.msra.mxu0 0.0
    %251 = vmatprep.subr.mxu0 0.0
    %252 = vmatpush1.msra.mxu0 0.0
    %253 = vmatprep.subr.mxu0 0.0
    %254 = vmatpush1.msra.mxu0 0.0
    %255 = vmatprep.subr.mxu0 0.0
    %256 = vmatpush1.msra.mxu0 0.0
    %257 = vmatprep.subr.mxu0 0.0
    %258 = vmatpush1.msra.mxu0 0.0
    %259 = vmatprep.subr.mxu0 0.0
    %260 = vmatpush1.msra.mxu0 0.0
    %261 = vmatprep.subr.mxu0 0.0
    %262 = vmatpush1.msra.mxu0 0.0
    %263 = vmatprep.subr.mxu0 0.0
    %264 = vmatpush1.msra.mxu0 0.0
    %265 = vmatprep.subr.mxu0 0.0
    %266 = vmatpush1.msra.mxu0 0.0
    %267 = vmatprep.subr.mxu0 0.0
    %268 = vmatpush1.msra.mxu0 0.0
    %269 = vmatprep.subr.mxu0 0.0
    %270 = vmatpush1.msra.mxu0 0.0
    %271 = vmatprep.subr.mxu0 0.0
    %272 = vmatpush1.msra.mxu0 0.0
    %273 = vmatprep.subr.mxu0 0.0
    %274 = vmatpush1.msra.mxu0 0.0
    %275 = vmatprep.subr.mxu0 0.0
    %276 = vmatpush1.msra.mxu0 0.0
    %277 = vmatprep.subr.mxu0 0.0
    %278 = vmatpush1.msra.mxu0 0.0
    %279 = vmatprep.subr.mxu0 0.0
    %280 = vmatpush1.msra.mxu0 0.0
    %281 = vmatprep.subr.mxu0 0.0
    %282 = vmatpush1.msra.mxu0 0.0
    %283 = vmatprep.subr.mxu0 0.0
    %284 = vmatpush1.msra.mxu0 0.0
    %285 = vmatprep.subr.mxu0 0.0
    %286 = vmatpush1.msra.mxu0 0.0
    %287 = vmatprep.subr.mxu0 0.0
    %288 = vmatpush1.msra.mxu0 0.0
    %289 = vmatprep.subr.mxu0 0.0
    %290 = vmatpush1.msra.mxu0 0.0
    %291 = vmatprep.subr.mxu0 0.0
    %292 = vmatpush1.msra.mxu0 0.0
    %293 = vmatprep.subr.mxu0 0.0
    %294 = vmatpush1.msra.mxu0 0.0
    %295 = vmatprep.subr.mxu0 0.0
    %296 = vmatpush1.msra.mxu0 0.0
    %297 = vmatprep.subr.mxu0 0.0
    %298 = vmatpush1.msra.mxu0 0.0
    %299 = vmatprep.mubr.f32.mxu0 0.0
    %300 = vmatmul.mubr.f32.gmra.mrb[0].mxu0 %v233
    %v301 = vpop.f32.mrb[0].mxu0
    %v302 = vadd.f32 0.0, %v301
    %v303 = vpop.f32.mrb[0].mxu0
    %v304 = vadd.f32 0.0, %v303
    %305 = vdwg.mxu0
    %306 = vmatprep.subr.mxu0 %v226
    %307 = vmatpush1.msra.mxu0 %v225
    %308 = vmatprep.subr.mxu0 0.0
    %309 = vmatpush1.msra.mxu0 0.0
    %310 = vmatprep.subr.mxu0 0.0
    %311 = vmatpush1.msra.mxu0 0.0
    %312 = vmatprep.subr.mxu0 0.0
    %313 = vmatpush1.msra.mxu0 0.0
    %314 = vmatprep.subr.mxu0 0.0
    %315 = vmatpush1.msra.mxu0 0.0
    %316 = vmatprep.subr.mxu0 0.0
    %317 = vmatpush1.msra.mxu0 0.0
    %318 = vmatprep.subr.mxu0 0.0
    %319 = vmatpush1.msra.mxu0 0.0
    %320 = vmatprep.subr.mxu0 0.0
    %321 = vmatpush1.msra.mxu0 0.0
    %322 = vmatprep.subr.mxu0 0.0
    %323 = vmatpush1.msra.mxu0 0.0
    %324 = vmatprep.subr.mxu0 0.0
    %325 = vmatpush1.msra.mxu0 0.0
    %326 = vmatprep.subr.mxu0 0.0
    %327 = vmatpush1.msra.mxu0 0.0
    %328 = vmatprep.subr.mxu0 0.0
    %329 = vmatpush1.msra.mxu0 0.0
    %330 = vmatprep.subr.mxu0 0.0
    %331 = vmatpush1.msra.mxu0 0.0
    %332 = vmatprep.subr.mxu0 0.0
    %333 = vmatpush1.msra.mxu0 0.0
    %334 = vmatprep.subr.mxu0 0.0
    %335 = vmatpush1.msra.mxu0 0.0
    %336 = vmatprep.subr.mxu0 0.0
    %337 = vmatpush1.msra.mxu0 0.0
    %338 = vmatprep.subr.mxu0 0.0
    %339 = vmatpush1.msra.mxu0 0.0
    %340 = vmatprep.subr.mxu0 0.0
    %341 = vmatpush1.msra.mxu0 0.0
    %342 = vmatprep.subr.mxu0 0.0
    %343 = vmatpush1.msra.mxu0 0.0
    %344 = vmatprep.subr.mxu0 0.0
    %345 = vmatpush1.msra.mxu0 0.0
    %346 = vmatprep.subr.mxu0 0.0
    %347 = vmatpush1.msra.mxu0 0.0
    %348 = vmatprep.subr.mxu0 0.0
    %349 = vmatpush1.msra.mxu0 0.0
    %350 = vmatprep.subr.mxu0 0.0
    %351 = vmatpush1.msra.mxu0 0.0
    %352 = vmatprep.subr.mxu0 0.0
    %353 = vmatpush1.msra.mxu0 0.0
    %354 = vmatprep.subr.mxu0 0.0
    %355 = vmatpush1.msra.mxu0 0.0
    %356 = vmatprep.subr.mxu0 0.0
    %357 = vmatpush1.msra.mxu0 0.0
    %358 = vmatprep.subr.mxu0 0.0
    %359 = vmatpush1.msra.mxu0 0.0
    %360 = vmatprep.subr.mxu0 0.0
    %361 = vmatpush1.msra.mxu0 0.0
    %362 = vmatprep.subr.mxu0 0.0
    %363 = vmatpush1.msra.mxu0 0.0
    %364 = vmatprep.subr.mxu0 0.0
    %365 = vmatpush1.msra.mxu0 0.0
    %366 = vmatprep.subr.mxu0 0.0
    %367 = vmatpush1.msra.mxu0 0.0
    %368 = vmatprep.subr.mxu0 0.0
    %369 = vmatpush1.msra.mxu0 0.0
    %370 = vmatprep.mubr.f32.mxu0 0.0
    %371 = vmatmul.mubr.f32.gmra.mrb[0].mxu0 %v233
    %v372 = vpop.f32.mrb[0].mxu0
    %v373 = vadd.f32 0.0, %v372
    %v374 = vpop.f32.mrb[0].mxu0
    %v375 = vadd.f32 0.0, %v374
    %376 = vdwg.mxu0
    %377 = vmatprep.subr.mxu0 %v228
    %378 = vmatpush1.msra.mxu0 %v227
    %379 = vmatprep.subr.mxu0 0.0
    %380 = vmatpush1.msra.mxu0 0.0
    %381 = vmatprep.subr.mxu0 0.0
    %382 = vmatpush1.msra.mxu0 0.0
    %383 = vmatprep.subr.mxu0 0.0
    %384 = vmatpush1.msra.mxu0 0.0
    %385 = vmatprep.subr.mxu0 0.0
    %386 = vmatpush1.msra.mxu0 0.0
    %387 = vmatprep.subr.mxu0 0.0
    %388 = vmatpush1.msra.mxu0 0.0
    %389 = vmatprep.subr.mxu0 0.0
    %390 = vmatpush1.msra.mxu0 0.0
    %391 = vmatprep.subr.mxu0 0.0
    %392 = vmatpush1.msra.mxu0 0.0
    %393 = vmatprep.subr.mxu0 0.0
    %394 = vmatpush1.msra.mxu0 0.0
    %395 = vmatprep.subr.mxu0 0.0
    %396 = vmatpush1.msra.mxu0 0.0
    %397 = vmatprep.subr.mxu0 0.0
    %398 = vmatpush1.msra.mxu0 0.0
    %399 = vmatprep.subr.mxu0 0.0
    %400 = vmatpush1.msra.mxu0 0.0
    %401 = vmatprep.subr.mxu0 0.0
    %402 = vmatpush1.msra.mxu0 0.0
    %403 = vmatprep.subr.mxu0 0.0
    %404 = vmatpush1.msra.mxu0 0.0
    %405 = vmatprep.subr.mxu0 0.0
    %406 = vmatpush1.msra.mxu0 0.0
    %407 = vmatprep.subr.mxu0 0.0
    %408 = vmatpush1.msra.mxu0 0.0
    %409 = vmatprep.subr.mxu0 0.0
    %410 = vmatpush1.msra.mxu0 0.0
    %411 = vmatprep.subr.mxu0 0.0
    %412 = vmatpush1.msra.mxu0 0.0
    %413 = vmatprep.subr.mxu0 0.0
    %414 = vmatpush1.msra.mxu0 0.0
    %415 = vmatprep.subr.mxu0 0.0
    %416 = vmatpush1.msra.mxu0 0.0
    %417 = vmatprep.subr.mxu0 0.0
    %418 = vmatpush1.msra.mxu0 0.0
    %419 = vmatprep.subr.mxu0 0.0
    %420 = vmatpush1.msra.mxu0 0.0
    %421 = vmatprep.subr.mxu0 0.0
    %422 = vmatpush1.msra.mxu0 0.0
    %423 = vmatprep.subr.mxu0 0.0
    %424 = vmatpush1.msra.mxu0 0.0
    %425 = vmatprep.subr.mxu0 0.0
    %426 = vmatpush1.msra.mxu0 0.0
    %427 = vmatprep.subr.mxu0 0.0
    %428 = vmatpush1.msra.mxu0 0.0
    %429 = vmatprep.subr.mxu0 0.0
    %430 = vmatpush1.msra.mxu0 0.0
    %431 = vmatprep.subr.mxu0 0.0
    %432 = vmatpush1.msra.mxu0 0.0
    %433 = vmatprep.subr.mxu0 0.0
    %434 = vmatpush1.msra.mxu0 0.0
    %435 = vmatprep.subr.mxu0 0.0
    %436 = vmatpush1.msra.mxu0 0.0
    %437 = vmatprep.subr.mxu0 0.0
    %438 = vmatpush1.msra.mxu0 0.0
    %439 = vmatprep.subr.mxu0 0.0
    %440 = vmatpush1.msra.mxu0 0.0
    %441 = vmatprep.mubr.f32.mxu0 0.0
    %442 = vmatmul.mubr.f32.gmra.mrb[0].mxu0 %v233
    %v443 = vpop.f32.mrb[0].mxu0
    %v444 = vadd.f32 0.0, %v443
    %v445 = vpop.f32.mrb[0].mxu0
    %v446 = vadd.f32 0.0, %v445
    %447 = vdwg.mxu0
    %448 = vmatprep.subr.mxu0 %v230
    %449 = vmatpush1.msra.mxu0 %v229
    %450 = vmatprep.subr.mxu0 0.0
    %451 = vmatpush1.msra.mxu0 0.0
    %452 = vmatprep.subr.mxu0 0.0
    %453 = vmatpush1.msra.mxu0 0.0
    %454 = vmatprep.subr.mxu0 0.0
    %455 = vmatpush1.msra.mxu0 0.0
    %456 = vmatprep.subr.mxu0 0.0
    %457 = vmatpush1.msra.mxu0 0.0
    %458 = vmatprep.subr.mxu0 0.0
    %459 = vmatpush1.msra.mxu0 0.0
    %460 = vmatprep.subr.mxu0 0.0
    %461 = vmatpush1.msra.mxu0 0.0
    %462 = vmatprep.subr.mxu0 0.0
    %463 = vmatpush1.msra.mxu0 0.0
    %464 = vmatprep.subr.mxu0 0.0
    %465 = vmatpush1.msra.mxu0 0.0
    %466 = vmatprep.subr.mxu0 0.0
    %467 = vmatpush1.msra.mxu0 0.0
    %468 = vmatprep.subr.mxu0 0.0
    %469 = vmatpush1.msra.mxu0 0.0
    %470 = vmatprep.subr.mxu0 0.0
    %471 = vmatpush1.msra.mxu0 0.0
    %472 = vmatprep.subr.mxu0 0.0
    %473 = vmatpush1.msra.mxu0 0.0
    %474 = vmatprep.subr.mxu0 0.0
    %475 = vmatpush1.msra.mxu0 0.0
    %476 = vmatprep.subr.mxu0 0.0
    %477 = vmatpush1.msra.mxu0 0.0
    %478 = vmatprep.subr.mxu0 0.0
    %479 = vmatpush1.msra.mxu0 0.0
    %480 = vmatprep.subr.mxu0 0.0
    %481 = vmatpush1.msra.mxu0 0.0
    %482 = vmatprep.subr.mxu0 0.0
    %483 = vmatpush1.msra.mxu0 0.0
    %484 = vmatprep.subr.mxu0 0.0
    %485 = vmatpush1.msra.mxu0 0.0
    %486 = vmatprep.subr.mxu0 0.0
    %487 = vmatpush1.msra.mxu0 0.0
    %488 = vmatprep.subr.mxu0 0.0
    %489 = vmatpush1.msra.mxu0 0.0
    %490 = vmatprep.subr.mxu0 0.0
    %491 = vmatpush1.msra.mxu0 0.0
    %492 = vmatprep.subr.mxu0 0.0
    %493 = vmatpush1.msra.mxu0 0.0
    %494 = vmatprep.subr.mxu0 0.0
    %495 = vmatpush1.msra.mxu0 0.0
    %496 = vmatprep.subr.mxu0 0.0
    %497 = vmatpush1.msra.mxu0 0.0
    %498 = vmatprep.subr.mxu0 0.0
    %499 = vmatpush1.msra.mxu0 0.0
    %500 = vmatprep.subr.mxu0 0.0
    %501 = vmatpush1.msra.mxu0 0.0
    %502 = vmatprep.subr.mxu0 0.0
    %503 = vmatpush1.msra.mxu0 0.0
    %504 = vmatprep.subr.mxu0 0.0
    %505 = vmatpush1.msra.mxu0 0.0
    %506 = vmatprep.subr.mxu0 0.0
    %507 = vmatpush1.msra.mxu0 0.0
    %508 = vmatprep.subr.mxu0 0.0
    %509 = vmatpush1.msra.mxu0 0.0
    %510 = vmatprep.subr.mxu0 0.0
    %511 = vmatpush1.msra.mxu0 0.0
    %512 = vmatprep.mubr.f32.mxu0 0.0
    %513 = vmatmul.mubr.f32.gmra.mrb[0].mxu0 %v233
    %v514 = vpop.f32.mrb[0].mxu0
    %v515 = vadd.f32 0.0, %v514
    %v516 = vpop.f32.mrb[0].mxu0
    %v517 = vadd.f32 0.0, %v516
    %518 = vdwg.mxu0
    %v527 = vcombine.low %v302, %v304
    %v528 = vcombine.low %v373, %v375
    %v529 = vcombine.low %v444, %v446
    %v530 = vcombine.low %v515, %v517
    %535 = vst [vmem:[#allocation10] sm:$0xff] %v527
    %536 = vst [vmem:[#allocation10 + $0x8] sm:$0xff] %v528
    %537 = vst [vmem:[#allocation10 + $0x10] sm:$0xff] %v529
    %538 = vst [vmem:[#allocation10 + $0x18] sm:$0xff] %v530
    %p539 = scmp.eq.s32.totalorder 0, 0
    // Predicated region
    $region34: #{tpu_custom_call.1} parent=1 // pred_check
      %p540 = pneg %p539
    $region35: #{tpu_custom_call.1} parent=1 // pred_check_branch
      %542 = sbr.rel (%p540) target = $region37
    $region36: #{tpu_custom_call.1} parent=1 // pred_region
      %543 = vmatprep.subr.mxu0 0.0
      %544 = vmatpush1.xpose.msra.mxu0 %v70
      %545 = vmatprep.subr.mxu0 0.0
      %546 = vmatpush1.xpose.msra.mxu0 0.0
      %547 = vmatprep.subr.mxu0 0.0
      %548 = vmatpush1.xpose.msra.mxu0 0.0
      %549 = vmatprep.subr.mxu0 0.0
      %550 = vmatpush1.xpose.msra.mxu0 0.0
      %551 = vmatprep.subr.mxu0 0.0
      %552 = vmatpush1.xpose.msra.mxu0 0.0
      %553 = vmatprep.subr.mxu0 0.0
      %554 = vmatpush1.xpose.msra.mxu0 0.0
      %555 = vmatprep.subr.mxu0 0.0
      %556 = vmatpush1.xpose.msra.mxu0 0.0
      %557 = vmatprep.subr.mxu0 0.0
      %558 = vmatpush1.xpose.msra.mxu0 0.0
      %559 = vmatprep.subr.mxu0 0.0
      %560 = vmatpush1.xpose.msra.mxu0 0.0
      %561 = vmatprep.subr.mxu0 0.0
      %562 = vmatpush1.xpose.msra.mxu0 0.0
      %563 = vmatprep.subr.mxu0 0.0
      %564 = vmatpush1.xpose.msra.mxu0 0.0
      %565 = vmatprep.subr.mxu0 0.0
      %566 = vmatpush1.xpose.msra.mxu0 0.0
      %567 = vmatprep.subr.mxu0 0.0
      %568 = vmatpush1.xpose.msra.mxu0 0.0
      %569 = vmatprep.subr.mxu0 0.0
      %570 = vmatpush1.xpose.msra.mxu0 0.0
      %571 = vmatprep.subr.mxu0 0.0
      %572 = vmatpush1.xpose.msra.mxu0 0.0
      %573 = vmatprep.subr.mxu0 0.0
      %574 = vmatpush1.xpose.msra.mxu0 0.0
      %575 = vmatprep.subr.mxu0 0.0
      %576 = vmatpush1.xpose.msra.mxu0 0.0
      %577 = vmatprep.subr.mxu0 0.0
      %578 = vmatpush1.xpose.msra.mxu0 0.0
      %579 = vmatprep.subr.mxu0 0.0
      %580 = vmatpush1.xpose.msra.mxu0 0.0
      %581 = vmatprep.subr.mxu0 0.0
      %582 = vmatpush1.xpose.msra.mxu0 0.0
      %583 = vmatprep.subr.mxu0 0.0
      %584 = vmatpush1.xpose.msra.mxu0 0.0
      %585 = vmatprep.subr.mxu0 0.0
      %586 = vmatpush1.xpose.msra.mxu0 0.0
      %587 = vmatprep.subr.mxu0 0.0
      %588 = vmatpush1.xpose.msra.mxu0 0.0
      %589 = vmatprep.subr.mxu0 0.0
      %590 = vmatpush1.xpose.msra.mxu0 0.0
      %591 = vmatprep.subr.mxu0 0.0
      %592 = vmatpush1.xpose.msra.mxu0 0.0
      %593 = vmatprep.subr.mxu0 0.0
      %594 = vmatpush1.xpose.msra.mxu0 0.0
      %595 = vmatprep.subr.mxu0 0.0
      %596 = vmatpush1.xpose.msra.mxu0 0.0
      %597 = vmatprep.subr.mxu0 0.0
      %598 = vmatpush1.xpose.msra.mxu0 0.0
      %599 = vmatprep.subr.mxu0 0.0
      %600 = vmatpush1.xpose.msra.mxu0 0.0
      %601 = vmatprep.subr.mxu0 0.0
      %602 = vmatpush1.xpose.msra.mxu0 0.0
      %603 = vmatprep.subr.mxu0 0.0
      %604 = vmatpush1.xpose.msra.mxu0 0.0
      %605 = vmatprep.subr.mxu0 0.0
      %606 = vmatpush1.xpose.msra.mxu0 0.0
      %607 = vmatprep.mubr.f32.mxu0 0.0
      %608 = vmatmul.mubr.f32.gmra.mrb[0].mxu0 %v70
      %v609 = vpop.f32.mrb[0].mxu0
      %v610 = vadd.f32 0.0, %v609
      %v611 = vpop.f32.mrb[0].mxu0
      %612 = vdwg.mxu0
      %v613 = vlaneseq
      %v614 = vshrl.u32 %v613, 7
      %v615 = vlaneseq
      %v616 = vand.u32 %v615, 127
      %vm617 = vcmp.eq.s32.totalorder %v614, %v616
      %v618 = vsel %vm617, 1, 0
      %v619 = vcvt.s32.f32 %v618
      %v620 = vsub.f32 %v610, %v619
      %v621 = vmul.f32 %v620, %v620
      %v622 = vsel %vm231, %v621, 0.0
      %623 = vadd.xlane.f32.xlu0 %v622
      %v624 = vpop.xlane.xlu0 %623
      %v625 = vrot.slane %v624, 4
      %v626 = vadd.f32 %v624, %v625
      %v627 = vrot.slane %v626, 2
      %v628 = vadd.f32 %v626, %v627
      %v629 = vrot.slane %v628, 1
      %v630 = vadd.f32 %v628, %v629
      %s631 = vtos %v630
      %s632 = smul.f32 %s631, 0.015625
      %633 = vmatprep.subr.mxu0 0.0
      %634 = vmatpush1.xpose.msra.mxu0 %v69
      %635 = vmatprep.subr.mxu0 0.0
      %636 = vmatpush1.xpose.msra.mxu0 0.0
      %637 = vmatprep.subr.mxu0 0.0
      %638 = vmatpush1.xpose.msra.mxu0 0.0
      %639 = vmatprep.subr.mxu0 0.0
      %640 = vmatpush1.xpose.msra.mxu0 0.0
      %641 = vmatprep.subr.mxu0 0.0
      %642 = vmatpush1.xpose.msra.mxu0 0.0
      %643 = vmatprep.subr.mxu0 0.0
      %644 = vmatpush1.xpose.msra.mxu0 0.0
      %645 = vmatprep.subr.mxu0 0.0
      %646 = vmatpush1.xpose.msra.mxu0 0.0
      %647 = vmatprep.subr.mxu0 0.0
      %648 = vmatpush1.xpose.msra.mxu0 0.0
      %649 = vmatprep.subr.mxu0 0.0
      %650 = vmatpush1.xpose.msra.mxu0 0.0
      %651 = vmatprep.subr.mxu0 0.0
      %652 = vmatpush1.xpose.msra.mxu0 0.0
      %653 = vmatprep.subr.mxu0 0.0
      %654 = vmatpush1.xpose.msra.mxu0 0.0
      %655 = vmatprep.subr.mxu0 0.0
      %656 = vmatpush1.xpose.msra.mxu0 0.0
      %657 = vmatprep.subr.mxu0 0.0
      %658 = vmatpush1.xpose.msra.mxu0 0.0
      %659 = vmatprep.subr.mxu0 0.0
      %660 = vmatpush1.xpose.msra.mxu0 0.0
      %661 = vmatprep.subr.mxu0 0.0
      %662 = vmatpush1.xpose.msra.mxu0 0.0
      %663 = vmatprep.subr.mxu0 0.0
      %664 = vmatpush1.xpose.msra.mxu0 0.0
      %665 = vmatprep.subr.mxu0 0.0
      %666 = vmatpush1.xpose.msra.mxu0 0.0
      %667 = vmatprep.subr.mxu0 0.0
      %668 = vmatpush1.xpose.msra.mxu0 0.0
      %669 = vmatprep.subr.mxu0 0.0
      %670 = vmatpush1.xpose.msra.mxu0 0.0
      %671 = vmatprep.subr.mxu0 0.0
      %672 = vmatpush1.xpose.msra.mxu0 0.0
      %673 = vmatprep.subr.mxu0 0.0
      %674 = vmatpush1.xpose.msra.mxu0 0.0
      %675 = vmatprep.subr.mxu0 0.0
      %676 = vmatpush1.xpose.msra.mxu0 0.0
      %677 = vmatprep.subr.mxu0 0.0
      %678 = vmatpush1.xpose.msra.mxu0 0.0
      %679 = vmatprep.subr.mxu0 0.0
      %680 = vmatpush1.xpose.msra.mxu0 0.0
      %681 = vmatprep.subr.mxu0 0.0
      %682 = vmatpush1.xpose.msra.mxu0 0.0
      %683 = vmatprep.subr.mxu0 0.0
      %684 = vmatpush1.xpose.msra.mxu0 0.0
      %685 = vmatprep.subr.mxu0 0.0
      %686 = vmatpush1.xpose.msra.mxu0 0.0
      %687 = vmatprep.subr.mxu0 0.0
      %688 = vmatpush1.xpose.msra.mxu0 0.0
      %689 = vmatprep.subr.mxu0 0.0
      %690 = vmatpush1.xpose.msra.mxu0 0.0
      %691 = vmatprep.subr.mxu0 0.0
      %692 = vmatpush1.xpose.msra.mxu0 0.0
      %693 = vmatprep.subr.mxu0 0.0
      %694 = vmatpush1.xpose.msra.mxu0 0.0
      %695 = vmatprep.subr.mxu0 0.0
      %696 = vmatpush1.xpose.msra.mxu0 0.0
      %697 = vmatprep.mubr.f32.mxu0 0.0
      %698 = vmatmul.mubr.f32.gmra.mrb[0].mxu0 %v69
      %v699 = vpop.f32.mrb[0].mxu0
      %v700 = vadd.f32 0.0, %v699
      %v701 = vpop.f32.mrb[0].mxu0
      %702 = vdwg.mxu0
      %v703 = vsub.f32 %v700, %v619
      %v704 = vmul.f32 %v703, %v703
      %v705 = vsel %vm231, %v704, 0.0
      %706 = vadd.xlane.f32.xlu0 %v705
      %v707 = vpop.xlane.xlu0 %706
      %v708 = vrot.slane %v707, 4
      %v709 = vadd.f32 %v707, %v708
      %v710 = vrot.slane %v709, 2
      %v711 = vadd.f32 %v709, %v710
      %v712 = vrot.slane %v711, 1
      %v713 = vadd.f32 %v711, %v712
      %s714 = vtos %v713
      %s715 = smul.f32 %s714, 0.015625
      %s716 = sadd.f32 %s632, %s715
      %v717 = vld [vmem:[#allocation8] sm:$0xff]
      %v718 = vld [vmem:[#allocation8 + $0x8] sm:$0xff]
      %v719 = vld [vmem:[#allocation8 + $0x10] sm:$0xff]
      %v720 = vld [vmem:[#allocation8 + $0x18] sm:$0xff]
      %v721 = vld [vmem:[#allocation8 + $0x20] sm:$0xff]
      %v722 = vld [vmem:[#allocation8 + $0x28] sm:$0xff]
      %v723 = vld [vmem:[#allocation8 + $0x30] sm:$0xff]
      %v724 = vld [vmem:[#allocation8 + $0x38] sm:$0xff]
      %725 = vmatprep.subr.mxu0 %v718
      %726 = vmatpush1.xpose.msra.mxu0 %v717
      %727 = vmatprep.subr.mxu0 0.0
      %728 = vmatpush1.xpose.msra.mxu0 0.0
      %729 = vmatprep.subr.mxu0 0.0
      %730 = vmatpush1.xpose.msra.mxu0 0.0
      %731 = vmatprep.subr.mxu0 0.0
      %732 = vmatpush1.xpose.msra.mxu0 0.0
      %733 = vmatprep.subr.mxu0 0.0
      %734 = vmatpush1.xpose.msra.mxu0 0.0
      %735 = vmatprep.subr.mxu0 0.0
      %736 = vmatpush1.xpose.msra.mxu0 0.0
      %737 = vmatprep.subr.mxu0 0.0
      %738 = vmatpush1.xpose.msra.mxu0 0.0
      %739 = vmatprep.subr.mxu0 0.0
      %740 = vmatpush1.xpose.msra.mxu0 0.0
      %741 = vmatprep.subr.mxu0 0.0
      %742 = vmatpush1.xpose.msra.mxu0 0.0
      %743 = vmatprep.subr.mxu0 0.0
      %744 = vmatpush1.xpose.msra.mxu0 0.0
      %745 = vmatprep.subr.mxu0 0.0
      %746 = vmatpush1.xpose.msra.mxu0 0.0
      %747 = vmatprep.subr.mxu0 0.0
      %748 = vmatpush1.xpose.msra.mxu0 0.0
      %749 = vmatprep.subr.mxu0 0.0
      %750 = vmatpush1.xpose.msra.mxu0 0.0
      %751 = vmatprep.subr.mxu0 0.0
      %752 = vmatpush1.xpose.msra.mxu0 0.0
      %753 = vmatprep.subr.mxu0 0.0
      %754 = vmatpush1.xpose.msra.mxu0 0.0
      %755 = vmatprep.subr.mxu0 0.0
      %756 = vmatpush1.xpose.msra.mxu0 0.0
      %757 = vmatprep.subr.mxu0 0.0
      %758 = vmatpush1.xpose.msra.mxu0 0.0
      %759 = vmatprep.subr.mxu0 0.0
      %760 = vmatpush1.xpose.msra.mxu0 0.0
      %761 = vmatprep.subr.mxu0 0.0
      %762 = vmatpush1.xpose.msra.mxu0 0.0
      %763 = vmatprep.subr.mxu0 0.0
      %764 = vmatpush1.xpose.msra.mxu0 0.0
      %765 = vmatprep.subr.mxu0 0.0
      %766 = vmatpush1.xpose.msra.mxu0 0.0
      %767 = vmatprep.subr.mxu0 0.0
      %768 = vmatpush1.xpose.msra.mxu0 0.0
      %769 = vmatprep.subr.mxu0 0.0
      %770 = vmatpush1.xpose.msra.mxu0 0.0
      %771 = vmatprep.subr.mxu0 0.0
      %772 = vmatpush1.xpose.msra.mxu0 0.0
      %773 = vmatprep.subr.mxu0 0.0
      %774 = vmatpush1.xpose.msra.mxu0 0.0
      %775 = vmatprep.subr.mxu0 0.0
      %776 = vmatpush1.xpose.msra.mxu0 0.0
      %777 = vmatprep.subr.mxu0 0.0
      %778 = vmatpush1.xpose.msra.mxu0 0.0
      %779 = vmatprep.subr.mxu0 0.0
      %780 = vmatpush1.xpose.msra.mxu0 0.0
      %781 = vmatprep.subr.mxu0 0.0
      %782 = vmatpush1.xpose.msra.mxu0 0.0
      %783 = vmatprep.subr.mxu0 0.0
      %784 = vmatpush1.xpose.msra.mxu0 0.0
      %785 = vmatprep.subr.mxu0 0.0
      %786 = vmatpush1.xpose.msra.mxu0 0.0
      %787 = vmatprep.subr.mxu0 0.0
      %788 = vmatpush1.xpose.msra.mxu0 0.0
      %789 = vmatprep.mubr.f32.mxu0 %v718
      %790 = vmatmul.mubr.f32.gmra.mrb[0].mxu0 %v717
      %v791 = vpop.f32.mrb[0].mxu0
      %v792 = vadd.f32 0.0, %v791
      %v793 = vpop.f32.mrb[0].mxu0
      %794 = vdwg.mxu0
      %795 = vmatprep.subr.mxu0 %v720
      %796 = vmatpush1.xpose.msra.mxu0 %v719
      %797 = vmatprep.subr.mxu0 0.0
      %798 = vmatpush1.xpose.msra.mxu0 0.0
      %799 = vmatprep.subr.mxu0 0.0
      %800 = vmatpush1.xpose.msra.mxu0 0.0
      %801 = vmatprep.subr.mxu0 0.0
      %802 = vmatpush1.xpose.msra.mxu0 0.0
      %803 = vmatprep.subr.mxu0 0.0
      %804 = vmatpush1.xpose.msra.mxu0 0.0
      %805 = vmatprep.subr.mxu0 0.0
      %806 = vmatpush1.xpose.msra.mxu0 0.0
      %807 = vmatprep.subr.mxu0 0.0
      %808 = vmatpush1.xpose.msra.mxu0 0.0
      %809 = vmatprep.subr.mxu0 0.0
      %810 = vmatpush1.xpose.msra.mxu0 0.0
      %811 = vmatprep.subr.mxu0 0.0
      %812 = vmatpush1.xpose.msra.mxu0 0.0
      %813 = vmatprep.subr.mxu0 0.0
      %814 = vmatpush1.xpose.msra.mxu0 0.0
      %815 = vmatprep.subr.mxu0 0.0
      %816 = vmatpush1.xpose.msra.mxu0 0.0
      %817 = vmatprep.subr.mxu0 0.0
      %818 = vmatpush1.xpose.msra.mxu0 0.0
      %819 = vmatprep.subr.mxu0 0.0
      %820 = vmatpush1.xpose.msra.mxu0 0.0
      %821 = vmatprep.subr.mxu0 0.0
      %822 = vmatpush1.xpose.msra.mxu0 0.0
      %823 = vmatprep.subr.mxu0 0.0
      %824 = vmatpush1.xpose.msra.mxu0 0.0
      %825 = vmatprep.subr.mxu0 0.0
      %826 = vmatpush1.xpose.msra.mxu0 0.0
      %827 = vmatprep.subr.mxu0 0.0
      %828 = vmatpush1.xpose.msra.mxu0 0.0
      %829 = vmatprep.subr.mxu0 0.0
      %830 = vmatpush1.xpose.msra.mxu0 0.0
      %831 = vmatprep.subr.mxu0 0.0
      %832 = vmatpush1.xpose.msra.mxu0 0.0
      %833 = vmatprep.subr.mxu0 0.0
      %834 = vmatpush1.xpose.msra.mxu0 0.0
      %835 = vmatprep.subr.mxu0 0.0
      %836 = vmatpush1.xpose.msra.mxu0 0.0
      %837 = vmatprep.subr.mxu0 0.0
      %838 = vmatpush1.xpose.msra.mxu0 0.0
      %839 = vmatprep.subr.mxu0 0.0
      %840 = vmatpush1.xpose.msra.mxu0 0.0
      %841 = vmatprep.subr.mxu0 0.0
      %842 = vmatpush1.xpose.msra.mxu0 0.0
      %843 = vmatprep.subr.mxu0 0.0
      %844 = vmatpush1.xpose.msra.mxu0 0.0
      %845 = vmatprep.subr.mxu0 0.0
      %846 = vmatpush1.xpose.msra.mxu0 0.0
      %847 = vmatprep.subr.mxu0 0.0
      %848 = vmatpush1.xpose.msra.mxu0 0.0
      %849 = vmatprep.subr.mxu0 0.0
      %850 = vmatpush1.xpose.msra.mxu0 0.0
      %851 = vmatprep.subr.mxu0 0.0
      %852 = vmatpush1.xpose.msra.mxu0 0.0
      %853 = vmatprep.subr.mxu0 0.0
      %854 = vmatpush1.xpose.msra.mxu0 0.0
      %855 = vmatprep.subr.mxu0 0.0
      %856 = vmatpush1.xpose.msra.mxu0 0.0
      %857 = vmatprep.subr.mxu0 0.0
      %858 = vmatpush1.xpose.msra.mxu0 0.0
      %859 = vmatprep.mubr.f32.mxu0 %v720
      %860 = vmatmul.mubr.f32.gmra.mrb[0].mxu0 %v719
      %v861 = vpop.f32.mrb[0].mxu0
      %v862 = vadd.f32 %v792, %v861
      %v863 = vpop.f32.mrb[0].mxu0
      %864 = vdwg.mxu0
      %865 = vmatprep.subr.mxu0 %v722
      %866 = vmatpush1.xpose.msra.mxu0 %v721
      %867 = vmatprep.subr.mxu0 0.0
      %868 = vmatpush1.xpose.msra.mxu0 0.0
      %869 = vmatprep.subr.mxu0 0.0
      %870 = vmatpush1.xpose.msra.mxu0 0.0
      %871 = vmatprep.subr.mxu0 0.0
      %872 = vmatpush1.xpose.msra.mxu0 0.0
      %873 = vmatprep.subr.mxu0 0.0
      %874 = vmatpush1.xpose.msra.mxu0 0.0
      %875 = vmatprep.subr.mxu0 0.0
      %876 = vmatpush1.xpose.msra.mxu0 0.0
      %877 = vmatprep.subr.mxu0 0.0
      %878 = vmatpush1.xpose.msra.mxu0 0.0
      %879 = vmatprep.subr.mxu0 0.0
      %880 = vmatpush1.xpose.msra.mxu0 0.0
      %881 = vmatprep.subr.mxu0 0.0
      %882 = vmatpush1.xpose.msra.mxu0 0.0
      %883 = vmatprep.subr.mxu0 0.0
      %884 = vmatpush1.xpose.msra.mxu0 0.0
      %885 = vmatprep.subr.mxu0 0.0
      %886 = vmatpush1.xpose.msra.mxu0 0.0
      %887 = vmatprep.subr.mxu0 0.0
      %888 = vmatpush1.xpose.msra.mxu0 0.0
      %889 = vmatprep.subr.mxu0 0.0
      %890 = vmatpush1.xpose.msra.mxu0 0.0
      %891 = vmatprep.subr.mxu0 0.0
      %892 = vmatpush1.xpose.msra.mxu0 0.0
      %893 = vmatprep.subr.mxu0 0.0
      %894 = vmatpush1.xpose.msra.mxu0 0.0
      %895 = vmatprep.subr.mxu0 0.0
      %896 = vmatpush1.xpose.msra.mxu0 0.0
      %897 = vmatprep.subr.mxu0 0.0
      %898 = vmatpush1.xpose.msra.mxu0 0.0
      %899 = vmatprep.subr.mxu0 0.0
      %900 = vmatpush1.xpose.msra.mxu0 0.0
      %901 = vmatprep.subr.mxu0 0.0
      %902 = vmatpush1.xpose.msra.mxu0 0.0
      %903 = vmatprep.subr.mxu0 0.0
      %904 = vmatpush1.xpose.msra.mxu0 0.0
      %905 = vmatprep.subr.mxu0 0.0
      %906 = vmatpush1.xpose.msra.mxu0 0.0
      %907 = vmatprep.subr.mxu0 0.0
      %908 = vmatpush1.xpose.msra.mxu0 0.0
      %909 = vmatprep.subr.mxu0 0.0
      %910 = vmatpush1.xpose.msra.mxu0 0.0
      %911 = vmatprep.subr.mxu0 0.0
      %912 = vmatpush1.xpose.msra.mxu0 0.0
      %913 = vmatprep.subr.mxu0 0.0
      %914 = vmatpush1.xpose.msra.mxu0 0.0
      %915 = vmatprep.subr.mxu0 0.0
      %916 = vmatpush1.xpose.msra.mxu0 0.0
      %917 = vmatprep.subr.mxu0 0.0
      %918 = vmatpush1.xpose.msra.mxu0 0.0
      %919 = vmatprep.subr.mxu0 0.0
      %920 = vmatpush1.xpose.msra.mxu0 0.0
      %921 = vmatprep.subr.mxu0 0.0
      %922 = vmatpush1.xpose.msra.mxu0 0.0
      %923 = vmatprep.subr.mxu0 0.0
      %924 = vmatpush1.xpose.msra.mxu0 0.0
      %925 = vmatprep.subr.mxu0 0.0
      %926 = vmatpush1.xpose.msra.mxu0 0.0
      %927 = vmatprep.subr.mxu0 0.0
      %928 = vmatpush1.xpose.msra.mxu0 0.0
      %929 = vmatprep.mubr.f32.mxu0 %v722
      %930 = vmatmul.mubr.f32.gmra.mrb[0].mxu0 %v721
      %v931 = vpop.f32.mrb[0].mxu0
      %v932 = vadd.f32 %v862, %v931
      %v933 = vpop.f32.mrb[0].mxu0
      %934 = vdwg.mxu0
      %935 = vmatprep.subr.mxu0 %v724
      %936 = vmatpush1.xpose.msra.mxu0 %v723
      %937 = vmatprep.subr.mxu0 0.0
      %938 = vmatpush1.xpose.msra.mxu0 0.0
      %939 = vmatprep.subr.mxu0 0.0
      %940 = vmatpush1.xpose.msra.mxu0 0.0
      %941 = vmatprep.subr.mxu0 0.0
      %942 = vmatpush1.xpose.msra.mxu0 0.0
      %943 = vmatprep.subr.mxu0 0.0
      %944 = vmatpush1.xpose.msra.mxu0 0.0
      %945 = vmatprep.subr.mxu0 0.0
      %946 = vmatpush1.xpose.msra.mxu0 0.0
      %947 = vmatprep.subr.mxu0 0.0
      %948 = vmatpush1.xpose.msra.mxu0 0.0
      %949 = vmatprep.subr.mxu0 0.0
      %950 = vmatpush1.xpose.msra.mxu0 0.0
      %951 = vmatprep.subr.mxu0 0.0
      %952 = vmatpush1.xpose.msra.mxu0 0.0
      %953 = vmatprep.subr.mxu0 0.0
      %954 = vmatpush1.xpose.msra.mxu0 0.0
      %955 = vmatprep.subr.mxu0 0.0
      %956 = vmatpush1.xpose.msra.mxu0 0.0
      %957 = vmatprep.subr.mxu0 0.0
      %958 = vmatpush1.xpose.msra.mxu0 0.0
      %959 = vmatprep.subr.mxu0 0.0
      %960 = vmatpush1.xpose.msra.mxu0 0.0
      %961 = vmatprep.subr.mxu0 0.0
      %962 = vmatpush1.xpose.msra.mxu0 0.0
      %963 = vmatprep.subr.mxu0 0.0
      %964 = vmatpush1.xpose.msra.mxu0 0.0
      %965 = vmatprep.subr.mxu0 0.0
      %966 = vmatpush1.xpose.msra.mxu0 0.0
      %967 = vmatprep.subr.mxu0 0.0
      %968 = vmatpush1.xpose.msra.mxu0 0.0
      %969 = vmatprep.subr.mxu0 0.0
      %970 = vmatpush1.xpose.msra.mxu0 0.0
      %971 = vmatprep.subr.mxu0 0.0
      %972 = vmatpush1.xpose.msra.mxu0 0.0
      %973 = vmatprep.subr.mxu0 0.0
      %974 = vmatpush1.xpose.msra.mxu0 0.0
      %975 = vmatprep.subr.mxu0 0.0
      %976 = vmatpush1.xpose.msra.mxu0 0.0
      %977 = vmatprep.subr.mxu0 0.0
      %978 = vmatpush1.xpose.msra.mxu0 0.0
      %979 = vmatprep.subr.mxu0 0.0
      %980 = vmatpush1.xpose.msra.mxu0 0.0
      %981 = vmatprep.subr.mxu0 0.0
      %982 = vmatpush1.xpose.msra.mxu0 0.0
      %983 = vmatprep.subr.mxu0 0.0
      %984 = vmatpush1.xpose.msra.mxu0 0.0
      %985 = vmatprep.subr.mxu0 0.0
      %986 = vmatpush1.xpose.msra.mxu0 0.0
      %987 = vmatprep.subr.mxu0 0.0
      %988 = vmatpush1.xpose.msra.mxu0 0.0
      %989 = vmatprep.subr.mxu0 0.0
      %990 = vmatpush1.xpose.msra.mxu0 0.0
      %991 = vmatprep.subr.mxu0 0.0
      %992 = vmatpush1.xpose.msra.mxu0 0.0
      %993 = vmatprep.subr.mxu0 0.0
      %994 = vmatpush1.xpose.msra.mxu0 0.0
      %995 = vmatprep.subr.mxu0 0.0
      %996 = vmatpush1.xpose.msra.mxu0 0.0
      %997 = vmatprep.subr.mxu0 0.0
      %998 = vmatpush1.xpose.msra.mxu0 0.0
      %999 = vmatprep.mubr.f32.mxu0 %v724
      %1000 = vmatmul.mubr.f32.gmra.mrb[0].mxu0 %v723
      %v1001 = vpop.f32.mrb[0].mxu0
      %v1002 = vadd.f32 %v932, %v1001
      %v1003 = vpop.f32.mrb[0].mxu0
      %1004 = vdwg.mxu0
      %v1005 = vsub.f32 %v1002, %v619
      %v1006 = vmul.f32 %v1005, %v1005
      %v1007 = vsel %vm231, %v1006, 0.0
      %1008 = vadd.xlane.f32.xlu0 %v1007
      %v1009 = vpop.xlane.xlu0 %1008
      %v1010 = vrot.slane %v1009, 4
      %v1011 = vadd.f32 %v1009, %v1010
      %v1012 = vrot.slane %v1011, 2
      %v1013 = vadd.f32 %v1011, %v1012
      %v1014 = vrot.slane %v1013, 1
      %v1015 = vadd.f32 %v1013, %v1014
      %s1016 = vtos %v1015
      %s1017 = smul.f32 %s1016, 0.015625
      %s1018 = sadd.f32 %s716, %s1017
      %s1019 = smul.f32 %s1018, 0.1
      %v1020 = vstv %s1019
      %vm1021 = vcmask 0
      %1022 = vst.msk [vmem:[#allocation11] sm:$0x1] %vm1021, %v1020
    $region37: #{tpu_custom_call.1} parent=1 // pred_fallthru
      _
    // Predicated region
    $region38: #{tpu_custom_call.1} parent=1 // pred_check
      _
    $region39: #{tpu_custom_call.1} parent=1 // pred_check_branch
      %1024 = sbr.rel (0) target = $region41
    $region40: #{tpu_custom_call.1} parent=1 // pred_region
      %s1026 = ssub.s32 512, 512
      %1027 = vsyncadd [#allocation4], %s1026
      %s1029 = sshll.u32 [#allocation10], 4
      %s1030 = int_to_ptr.vmem [resolvable:$true] %s1029
      %1032 = dma.vmem_to_hbm [thread:$0]  %s1030, 512, %s4, [#allocation4]
    $region41: #{tpu_custom_call.1} parent=1 // pred_fallthru
      _
    // Predicated region
    $region42: #{tpu_custom_call.1} parent=1 // pred_check
      _
    $region43: #{tpu_custom_call.1} parent=1 // pred_check_branch
      %1034 = sbr.rel (0) target = $region45
    $region44: #{tpu_custom_call.1} parent=1 // pred_region
      %s1036 = ssub.s32 16, 16
      %1037 = vsyncadd [#allocation12], %s1036
      %s1039 = sshll.u32 [#allocation11], 4
      %s1040 = int_to_ptr.vmem [resolvable:$true] %s1039
      %1042 = dma.vmem_to_hbm [thread:$0]  %s1040, 16, %s5, [#allocation12]
    $region45: #{tpu_custom_call.1} parent=1 // pred_fallthru
      _
    // Predicated region
    $region46: #{tpu_custom_call.1} parent=1 // pred_check
      _
    $region47: #{tpu_custom_call.1} parent=1 // pred_check_branch
      %1044 = sbr.rel (0) target = $region49
    $region48: #{tpu_custom_call.1} parent=1 // pred_region
      %1045 = dma.done [#allocation4], 512
    $region49: #{tpu_custom_call.1} parent=1 // pred_fallthru
      _
    // Predicated region
    $region50: #{tpu_custom_call.1} parent=1 // pred_check
      _
    $region51: #{tpu_custom_call.1} parent=1 // pred_check_branch
      %1047 = sbr.rel (0) target = $region53
    $region52: #{tpu_custom_call.1} parent=1 // pred_region
      %1048 = dma.done [#allocation12], 16
    $region53: #{tpu_custom_call.1} parent=1 // pred_fallthru
      _
    %1049 = vsyncpa [#allocation3], 1
    %1050 = vsyncpa [#allocation6], 1
    %1051 = vsyncpa [#allocation9], 1
    %1052 = vsyncpa [#allocation4], 1
    %1053 = vsyncpa [#allocation12], 1

</llo_original>
